<compile_context>
chip_gen: v7x
topology: tpu7x:2x2x1
jax: 0.10.0
libtpu: 0.0.40
codegen_flags: <defaults>
</compile_context>

<pallas_src>
import functools

import jax
import jax.numpy as jnp
from jax.experimental import pallas as pl
from jax.experimental.pallas import tpu as pltpu


def _cdiv(a, b):
    return (a + b - 1) // b


def _round_up(a, b):
    return _cdiv(a, b) * b


def _vmem_capacity_bytes():
    """Physical per-core VMEM; conservative 64 MiB (v7x) fallback."""
    try:
        cap = getattr(pltpu.get_tpu_info(), "vmem_capacity_bytes", None)
        if cap:
            return int(cap)
    except Exception:
        pass
    return 64 * 1024 * 1024


def _dice_partials_kernel(score_ref, tgt_ref, out_ref, *, n_classes,
                          apply_softmax, has_pad):
    """One grid step: one batch element, one row tile.

    score_ref : (1, C, TR, 128) input dtype
    tgt_ref   : (1, TR, 128)    int32 (padding = -1)
    out_ref   : (1, 1, 3*C)     float32 SMEM; [3*cls+0,1,2] = intersect, z_sum, y_sum
    """
    t = tgt_ref[0]                                            # (TR, 128) int32

    if apply_softmax:
        # Fused softmax over the class axis; normalized tensor never
        # materialized: one exp pass, one exact divide for the denominator.
        s_in = score_ref[0]                                   # (C, TR, 128) in-dtype
        m = jnp.max(s_in, axis=0, keepdims=True)              # class max (in-dtype)
        e = jnp.exp((s_in - m).astype(jnp.float32))           # upcast only at exp
        inv_denom = 1.0 / jnp.sum(e, axis=0)                  # (TR, 128) f32
        if has_pad:
            # Fold the padding mask into the denominator ONCE instead of a
            # per-class select: padded columns contribute exactly 0.
            inv_denom = jnp.where(t >= 0, inv_denom, 0.0)

    for cls in range(n_classes):                              # static unroll, C small
        if apply_softmax:
            p_c = e[cls] * inv_denom                          # (TR, 128) f32
        else:
            p_c = score_ref[0, cls].astype(jnp.float32)       # zero-padded -> safe

        mask = t == cls                                       # on-the-fly one-hot slice
        intersect = jnp.sum(jnp.where(mask, p_c, 0.0))        # no one-hot multiply
        z_sum = jnp.sum(p_c * p_c)
        y_sum = jnp.sum(mask, dtype=jnp.int32)                # integer count; t*t == t

        out_ref[0, 0, 3 * cls + 0] = intersect
        out_ref[0, 0, 3 * cls + 1] = z_sum
        out_ref[0, 0, 3 * cls + 2] = y_sum.astype(jnp.float32)


def dice_loss(inputs, target, weight=None, softmax=False):
    """JAX/Pallas equivalent of DiceLoss.forward.

    inputs: (N, C, H, W) scores (probabilities, or logits if softmax=True)
    target: (N, H, W) integer class labels in [0, C)
    """
    n, c, h, w = inputs.shape
    hw = h * w

    # --- layout: free reshape (no transpose), pad spatial axis to 128 lanes ---
    scores = inputs.reshape(n, c, hw)
    tgt = target.reshape(n, hw).astype(jnp.int32)
    lane_pad = (-hw) % 128
    if lane_pad:
        scores = jnp.pad(scores, ((0, 0), (0, 0), (0, lane_pad)))
        tgt = jnp.pad(tgt, ((0, 0), (0, lane_pad)), constant_values=-1)
    r = (hw + lane_pad) // 128                                # 128-lane rows

    # --- dtype-aware sublane multiple: 8 f32, 16 bf16, 32 int8/fp8 ---
    itemsize = scores.dtype.itemsize
    sublane = max(8, 32 // itemsize)

    # --- row-tile sizing against the real in-kernel footprint per row:
    #     double-buffered score + target blocks, plus the f32 temporaries
    #     (e, s-m, per-class temps) that live alongside them.              ---
    bytes_per_row = 2 * c * 128 * itemsize + 2 * 128 * 4
    bytes_per_row += (3 if softmax else 2) * c * 128 * 4
    vmem_phys = _vmem_capacity_bytes()
    budget = int(vmem_phys * 0.6)
    tr_cap = max(sublane,
                 min(4096, (budget // bytes_per_row) // sublane * sublane))

    tr = min(tr_cap, _round_up(r, sublane))
    # Megacore (v7x: 2 TensorCores): make sure there are >= 2 grid steps.
    if n * _cdiv(r, tr) < 2 and r >= 2 * sublane:
        tr = _round_up(_cdiv(r, 2), sublane)

    row_pad = (-r) % tr
    if row_pad:
        scores = jnp.pad(scores, ((0, 0), (0, 0), (0, row_pad * 128)))
        tgt = jnp.pad(tgt, ((0, 0), (0, row_pad * 128)), constant_values=-1)
    r_p = r + row_pad
    num_tiles = r_p // tr
    scores = scores.reshape(n, c, r_p, 128)
    tgt = tgt.reshape(n, r_p, 128)

    has_pad = bool(lane_pad or row_pad)
    elems = n * c * r_p * 128
    cost = pl.CostEstimate(
        flops=int(elems * (8 if softmax else 4)),
        transcendentals=int(elems) if softmax else 0,
        bytes_accessed=int(scores.size * itemsize + tgt.size * 4
                           + n * num_tiles * 3 * c * 4),
    )

    partials = pl.pallas_call(
        functools.partial(_dice_partials_kernel, n_classes=c,
                          apply_softmax=bool(softmax), has_pad=has_pad),
        out_shape=jax.ShapeDtypeStruct((n, num_tiles, 3 * c), jnp.float32),
        grid=(n, num_tiles),
        in_specs=[
            pl.BlockSpec((1, c, tr, 128), lambda b, t: (b, 0, t, 0)),  # scores
            pl.BlockSpec((1, tr, 128), lambda b, t: (b, t, 0)),        # targets
        ],
        out_specs=pl.BlockSpec((1, 1, 3 * c), lambda b, t: (b, t, 0),
                               memory_space=pltpu.MemorySpace.SMEM),
        compiler_params=pltpu.CompilerParams(
            dimension_semantics=("parallel", "parallel"),   # megacore-friendly
            vmem_limit_bytes=int(vmem_phys * 0.85),
        ),
        cost_estimate=cost,
    )(scores, tgt)

    # --- tiny JAX epilogue: per-class dice, weighting, mean over classes ---
    sums = jnp.sum(partials, axis=(0, 1)).reshape(c, 3)       # (C, 3) f32
    intersect, z_sum, y_sum = sums[:, 0], sums[:, 1], sums[:, 2]
    smooth = jnp.float32(1e-5)
    dice = 1.0 - (2.0 * intersect + smooth) / (z_sum + y_sum + smooth)

    if weight is None:
        weight = jnp.ones((c,), jnp.float32)
    else:
        weight = jnp.asarray(weight, jnp.float32)
    return jnp.sum(dice * weight) / jnp.float32(c)


def _dice_loss_ref(inputs, target, weight=None, softmax=False):
    """Pure-JAX reference mirroring the PyTorch module."""
    n, c, h, w = inputs.shape
    if softmax:
        inputs = jax.nn.softmax(inputs, axis=1)
    one_hot = (target[:, None, :, :]
               == jnp.arange(c)[None, :, None, None]).astype(jnp.float32)
    if weight is None:
        weight = [1.0] * c
    smooth = 1e-5
    loss = 0.0
    for i in range(c):
        s = inputs[:, i].astype(jnp.float32)
        t = one_hot[:, i]
        intersect = jnp.sum(s * t)
        y_sum = jnp.sum(t * t)
        z_sum = jnp.sum(s * s)
        dice = 1.0 - (2.0 * intersect + smooth) / (z_sum + y_sum + smooth)
        loss = loss + dice * weight[i]
    return loss / c


if __name__ == "__main__":
    key = jax.random.PRNGKey(0)
    k1, k2 = jax.random.split(key)

    N, C, H, W = 2, 4, 16, 16
    logits = jax.random.normal(k1, (N, C, H, W), dtype=jnp.float32)
    target = jax.random.randint(k2, (N, H, W), 0, C, dtype=jnp.int32)

    # softmax fused in-kernel
    loss = dice_loss(logits, target, weight=None, softmax=True)
    loss = jax.block_until_ready(loss)
    ref = _dice_loss_ref(logits, target, weight=None, softmax=True)
    assert jnp.allclose(loss, ref, rtol=1e-5, atol=1e-5), (loss, ref)

    # pre-normalized path + per-class weights
    probs = jax.nn.softmax(logits, axis=1)
    wts = [0.5, 1.0, 2.0, 1.5]
    loss2 = jax.block_until_ready(dice_loss(probs, target, weight=wts, softmax=False))
    ref2 = _dice_loss_ref(probs, target, weight=wts, softmax=False)
    assert jnp.allclose(loss2, ref2, rtol=1e-5, atol=1e-5), (loss2, ref2)

    print("KERNEL_OK")
</pallas_src>

<mosaic_0001>
module attributes {stable_mosaic.version = 11 : i64} {
  func.func @_dice_partials_kernel(%arg0: i32, %arg1: i32, %arg2: memref<1x4x8x128xf32, #tpu.memory_space<vmem>>, %arg3: memref<1x8x128xi32, #tpu.memory_space<vmem>>, %arg4: memref<1x1x12xf32, #tpu.memory_space<smem>>) attributes {dimension_semantics = [#tpu.dimension_semantics<parallel>, #tpu.dimension_semantics<parallel>], iteration_bounds = array<i64: 2, 1>, scalar_prefetch = 0 : i64, scratch_operands = 0 : i64, tpu.core_type = #tpu.core_type<tc>, window_params = [{transform_indices = @transform_0, window_bounds = array<i64: 1, 4, 8, 128>}, {transform_indices = @transform_1, window_bounds = array<i64: 1, 8, 128>}, {transform_indices = @transform_2, window_bounds = array<i64: 1, 1, 12>}]} {
    %c0 = arith.constant 0 : index
    %c0_0 = arith.constant 0 : index
    %c0_1 = arith.constant 0 : index
    %0 = vector.load %arg3[%c0, %c0_0, %c0_1] : memref<1x8x128xi32, #tpu.memory_space<vmem>>, vector<1x8x128xi32>
    %1 = vector.shape_cast %0 : vector<1x8x128xi32> to vector<8x128xi32>
    %c0_2 = arith.constant 0 : index
    %c0_3 = arith.constant 0 : index
    %c0_4 = arith.constant 0 : index
    %c0_5 = arith.constant 0 : index
    %2 = vector.load %arg2[%c0_2, %c0_3, %c0_4, %c0_5] : memref<1x4x8x128xf32, #tpu.memory_space<vmem>>, vector<1x4x8x128xf32>
    %3 = vector.shape_cast %2 : vector<1x4x8x128xf32> to vector<4x8x128xf32>
    %cst = arith.constant dense<0xFF800000> : vector<8x128xf32>
    %4 = vector.multi_reduction <maximumf>, %3, %cst [0] : vector<4x8x128xf32> to vector<8x128xf32>
    %5 = vector.shape_cast %4 : vector<8x128xf32> to vector<1x8x128xf32>
    %6 = vector.broadcast %5 : vector<1x8x128xf32> to vector<4x8x128xf32>
    %7 = arith.subf %3, %6 : vector<4x8x128xf32>
    %8 = math.exp %7 : vector<4x8x128xf32>
    %cst_6 = arith.constant dense<0.000000e+00> : vector<8x128xf32>
    %9 = vector.multi_reduction <add>, %8, %cst_6 [0] : vector<4x8x128xf32> to vector<8x128xf32>
    %cst_7 = arith.constant 1.000000e+00 : f32
    %10 = vector.broadcast %cst_7 : f32 to vector<8x128xf32>
    %11 = arith.divf %10, %9 : vector<8x128xf32>
    %c0_i32 = arith.constant 0 : i32
    %12 = vector.broadcast %c0_i32 : i32 to vector<8x128xi32>
    %13 = arith.cmpi sge, %1, %12 : vector<8x128xi32>
    %cst_8 = arith.constant 0.000000e+00 : f32
    %14 = vector.broadcast %cst_8 : f32 to vector<8x128xf32>
    %15 = arith.select %13, %11, %14 : vector<8x128xi1>, vector<8x128xf32>
    %16 = vector.extract_strided_slice %8 {offsets = [0, 0, 0], sizes = [1, 8, 128], strides = [1, 1, 1]} : vector<4x8x128xf32> to vector<1x8x128xf32>
    %17 = vector.shape_cast %16 : vector<1x8x128xf32> to vector<8x128xf32>
    %18 = arith.mulf %17, %15 : vector<8x128xf32>
    %c0_i32_9 = arith.constant 0 : i32
    %19 = vector.broadcast %c0_i32_9 : i32 to vector<8x128xi32>
    %20 = arith.cmpi eq, %1, %19 : vector<8x128xi32>
    %cst_10 = arith.constant 0.000000e+00 : f32
    %21 = vector.broadcast %cst_10 : f32 to vector<8x128xf32>
    %22 = arith.select %20, %18, %21 : vector<8x128xi1>, vector<8x128xf32>
    %23 = vector.shape_cast %22 : vector<8x128xf32> to vector<1x8x128xf32>
    %cst_11 = arith.constant dense<0.000000e+00> : vector<1xf32>
    %24 = vector.multi_reduction <add>, %23, %cst_11 [1, 2] : vector<1x8x128xf32> to vector<1xf32>
    %25 = vector.shape_cast %24 : vector<1xf32> to vector<1x1x1xf32>
    %26 = vector.extract %25[0, 0, 0] : f32 from vector<1x1x1xf32>
    %27 = arith.mulf %18, %18 : vector<8x128xf32>
    %28 = vector.shape_cast %27 : vector<8x128xf32> to vector<1x8x128xf32>
    %cst_12 = arith.constant dense<0.000000e+00> : vector<1xf32>
    %29 = vector.multi_reduction <add>, %28, %cst_12 [1, 2] : vector<1x8x128xf32> to vector<1xf32>
    %30 = vector.shape_cast %29 : vector<1xf32> to vector<1x1x1xf32>
    %31 = vector.extract %30[0, 0, 0] : f32 from vector<1x1x1xf32>
    %32 = arith.extui %20 : vector<8x128xi1> to vector<8x128xi32>
    %33 = vector.shape_cast %32 : vector<8x128xi32> to vector<1x8x128xi32>
    %cst_13 = arith.constant dense<0> : vector<1xi32>
    %34 = vector.multi_reduction <add>, %33, %cst_13 [1, 2] : vector<1x8x128xi32> to vector<1xi32>
    %35 = vector.shape_cast %34 : vector<1xi32> to vector<1x1x1xi32>
    %36 = vector.extract %35[0, 0, 0] : i32 from vector<1x1x1xi32>
    %c0_14 = arith.constant 0 : index
    %c0_15 = arith.constant 0 : index
    %c0_16 = arith.constant 0 : index
    %37 = memref.load %arg4[%c0_14, %c0_15, %c0_16] : memref<1x1x12xf32, #tpu.memory_space<smem>>
    memref.store %26, %arg4[%c0_14, %c0_15, %c0_16] : memref<1x1x12xf32, #tpu.memory_space<smem>>
    %c0_17 = arith.constant 0 : index
    %c0_18 = arith.constant 0 : index
    %c1 = arith.constant 1 : index
    %38 = memref.load %arg4[%c0_17, %c0_18, %c1] : memref<1x1x12xf32, #tpu.memory_space<smem>>
    memref.store %31, %arg4[%c0_17, %c0_18, %c1] : memref<1x1x12xf32, #tpu.memory_space<smem>>
    %39 = arith.sitofp %36 : i32 to f32
    %c0_19 = arith.constant 0 : index
    %c0_20 = arith.constant 0 : index
    %c2 = arith.constant 2 : index
    %40 = memref.load %arg4[%c0_19, %c0_20, %c2] : memref<1x1x12xf32, #tpu.memory_space<smem>>
    memref.store %39, %arg4[%c0_19, %c0_20, %c2] : memref<1x1x12xf32, #tpu.memory_space<smem>>
    %41 = vector.extract_strided_slice %8 {offsets = [1, 0, 0], sizes = [1, 8, 128], strides = [1, 1, 1]} : vector<4x8x128xf32> to vector<1x8x128xf32>
    %42 = vector.shape_cast %41 : vector<1x8x128xf32> to vector<8x128xf32>
    %43 = arith.mulf %42, %15 : vector<8x128xf32>
    %c1_i32 = arith.constant 1 : i32
    %44 = vector.broadcast %c1_i32 : i32 to vector<8x128xi32>
    %45 = arith.cmpi eq, %1, %44 : vector<8x128xi32>
    %cst_21 = arith.constant 0.000000e+00 : f32
    %46 = vector.broadcast %cst_21 : f32 to vector<8x128xf32>
    %47 = arith.select %45, %43, %46 : vector<8x128xi1>, vector<8x128xf32>
    %48 = vector.shape_cast %47 : vector<8x128xf32> to vector<1x8x128xf32>
    %cst_22 = arith.constant dense<0.000000e+00> : vector<1xf32>
    %49 = vector.multi_reduction <add>, %48, %cst_22 [1, 2] : vector<1x8x128xf32> to vector<1xf32>
    %50 = vector.shape_cast %49 : vector<1xf32> to vector<1x1x1xf32>
    %51 = vector.extract %50[0, 0, 0] : f32 from vector<1x1x1xf32>
    %52 = arith.mulf %43, %43 : vector<8x128xf32>
    %53 = vector.shape_cast %52 : vector<8x128xf32> to vector<1x8x128xf32>
    %cst_23 = arith.constant dense<0.000000e+00> : vector<1xf32>
    %54 = vector.multi_reduction <add>, %53, %cst_23 [1, 2] : vector<1x8x128xf32> to vector<1xf32>
    %55 = vector.shape_cast %54 : vector<1xf32> to vector<1x1x1xf32>
    %56 = vector.extract %55[0, 0, 0] : f32 from vector<1x1x1xf32>
    %57 = arith.extui %45 : vector<8x128xi1> to vector<8x128xi32>
    %58 = vector.shape_cast %57 : vector<8x128xi32> to vector<1x8x128xi32>
    %cst_24 = arith.constant dense<0> : vector<1xi32>
    %59 = vector.multi_reduction <add>, %58, %cst_24 [1, 2] : vector<1x8x128xi32> to vector<1xi32>
    %60 = vector.shape_cast %59 : vector<1xi32> to vector<1x1x1xi32>
    %61 = vector.extract %60[0, 0, 0] : i32 from vector<1x1x1xi32>
    %c0_25 = arith.constant 0 : index
    %c0_26 = arith.constant 0 : index
    %c3 = arith.constant 3 : index
    %62 = memref.load %arg4[%c0_25, %c0_26, %c3] : memref<1x1x12xf32, #tpu.memory_space<smem>>
    memref.store %51, %arg4[%c0_25, %c0_26, %c3] : memref<1x1x12xf32, #tpu.memory_space<smem>>
    %c0_27 = arith.constant 0 : index
    %c0_28 = arith.constant 0 : index
    %c4 = arith.constant 4 : index
    %63 = memref.load %arg4[%c0_27, %c0_28, %c4] : memref<1x1x12xf32, #tpu.memory_space<smem>>
    memref.store %56, %arg4[%c0_27, %c0_28, %c4] : memref<1x1x12xf32, #tpu.memory_space<smem>>
    %64 = arith.sitofp %61 : i32 to f32
    %c0_29 = arith.constant 0 : index
    %c0_30 = arith.constant 0 : index
    %c5 = arith.constant 5 : index
    %65 = memref.load %arg4[%c0_29, %c0_30, %c5] : memref<1x1x12xf32, #tpu.memory_space<smem>>
    memref.store %64, %arg4[%c0_29, %c0_30, %c5] : memref<1x1x12xf32, #tpu.memory_space<smem>>
    %66 = vector.extract_strided_slice %8 {offsets = [2, 0, 0], sizes = [1, 8, 128], strides = [1, 1, 1]} : vector<4x8x128xf32> to vector<1x8x128xf32>
    %67 = vector.shape_cast %66 : vector<1x8x128xf32> to vector<8x128xf32>
    %68 = arith.mulf %67, %15 : vector<8x128xf32>
    %c2_i32 = arith.constant 2 : i32
    %69 = vector.broadcast %c2_i32 : i32 to vector<8x128xi32>
    %70 = arith.cmpi eq, %1, %69 : vector<8x128xi32>
    %cst_31 = arith.constant 0.000000e+00 : f32
    %71 = vector.broadcast %cst_31 : f32 to vector<8x128xf32>
    %72 = arith.select %70, %68, %71 : vector<8x128xi1>, vector<8x128xf32>
    %73 = vector.shape_cast %72 : vector<8x128xf32> to vector<1x8x128xf32>
    %cst_32 = arith.constant dense<0.000000e+00> : vector<1xf32>
    %74 = vector.multi_reduction <add>, %73, %cst_32 [1, 2] : vector<1x8x128xf32> to vector<1xf32>
    %75 = vector.shape_cast %74 : vector<1xf32> to vector<1x1x1xf32>
    %76 = vector.extract %75[0, 0, 0] : f32 from vector<1x1x1xf32>
    %77 = arith.mulf %68, %68 : vector<8x128xf32>
    %78 = vector.shape_cast %77 : vector<8x128xf32> to vector<1x8x128xf32>
    %cst_33 = arith.constant dense<0.000000e+00> : vector<1xf32>
    %79 = vector.multi_reduction <add>, %78, %cst_33 [1, 2] : vector<1x8x128xf32> to vector<1xf32>
    %80 = vector.shape_cast %79 : vector<1xf32> to vector<1x1x1xf32>
    %81 = vector.extract %80[0, 0, 0] : f32 from vector<1x1x1xf32>
    %82 = arith.extui %70 : vector<8x128xi1> to vector<8x128xi32>
    %83 = vector.shape_cast %82 : vector<8x128xi32> to vector<1x8x128xi32>
    %cst_34 = arith.constant dense<0> : vector<1xi32>
    %84 = vector.multi_reduction <add>, %83, %cst_34 [1, 2] : vector<1x8x128xi32> to vector<1xi32>
    %85 = vector.shape_cast %84 : vector<1xi32> to vector<1x1x1xi32>
    %86 = vector.extract %85[0, 0, 0] : i32 from vector<1x1x1xi32>
    %c0_35 = arith.constant 0 : index
    %c0_36 = arith.constant 0 : index
    %c6 = arith.constant 6 : index
    %87 = memref.load %arg4[%c0_35, %c0_36, %c6] : memref<1x1x12xf32, #tpu.memory_space<smem>>
    memref.store %76, %arg4[%c0_35, %c0_36, %c6] : memref<1x1x12xf32, #tpu.memory_space<smem>>
    %c0_37 = arith.constant 0 : index
    %c0_38 = arith.constant 0 : index
    %c7 = arith.constant 7 : index
    %88 = memref.load %arg4[%c0_37, %c0_38, %c7] : memref<1x1x12xf32, #tpu.memory_space<smem>>
    memref.store %81, %arg4[%c0_37, %c0_38, %c7] : memref<1x1x12xf32, #tpu.memory_space<smem>>
    %89 = arith.sitofp %86 : i32 to f32
    %c0_39 = arith.constant 0 : index
    %c0_40 = arith.constant 0 : index
    %c8 = arith.constant 8 : index
    %90 = memref.load %arg4[%c0_39, %c0_40, %c8] : memref<1x1x12xf32, #tpu.memory_space<smem>>
    memref.store %89, %arg4[%c0_39, %c0_40, %c8] : memref<1x1x12xf32, #tpu.memory_space<smem>>
    %91 = vector.extract_strided_slice %8 {offsets = [3, 0, 0], sizes = [1, 8, 128], strides = [1, 1, 1]} : vector<4x8x128xf32> to vector<1x8x128xf32>
    %92 = vector.shape_cast %91 : vector<1x8x128xf32> to vector<8x128xf32>
    %93 = arith.mulf %92, %15 : vector<8x128xf32>
    %c3_i32 = arith.constant 3 : i32
    %94 = vector.broadcast %c3_i32 : i32 to vector<8x128xi32>
    %95 = arith.cmpi eq, %1, %94 : vector<8x128xi32>
    %cst_41 = arith.constant 0.000000e+00 : f32
    %96 = vector.broadcast %cst_41 : f32 to vector<8x128xf32>
    %97 = arith.select %95, %93, %96 : vector<8x128xi1>, vector<8x128xf32>
    %98 = vector.shape_cast %97 : vector<8x128xf32> to vector<1x8x128xf32>
    %cst_42 = arith.constant dense<0.000000e+00> : vector<1xf32>
    %99 = vector.multi_reduction <add>, %98, %cst_42 [1, 2] : vector<1x8x128xf32> to vector<1xf32>
    %100 = vector.shape_cast %99 : vector<1xf32> to vector<1x1x1xf32>
    %101 = vector.extract %100[0, 0, 0] : f32 from vector<1x1x1xf32>
    %102 = arith.mulf %93, %93 : vector<8x128xf32>
    %103 = vector.shape_cast %102 : vector<8x128xf32> to vector<1x8x128xf32>
    %cst_43 = arith.constant dense<0.000000e+00> : vector<1xf32>
    %104 = vector.multi_reduction <add>, %103, %cst_43 [1, 2] : vector<1x8x128xf32> to vector<1xf32>
    %105 = vector.shape_cast %104 : vector<1xf32> to vector<1x1x1xf32>
    %106 = vector.extract %105[0, 0, 0] : f32 from vector<1x1x1xf32>
    %107 = arith.extui %95 : vector<8x128xi1> to vector<8x128xi32>
    %108 = vector.shape_cast %107 : vector<8x128xi32> to vector<1x8x128xi32>
    %cst_44 = arith.constant dense<0> : vector<1xi32>
    %109 = vector.multi_reduction <add>, %108, %cst_44 [1, 2] : vector<1x8x128xi32> to vector<1xi32>
    %110 = vector.shape_cast %109 : vector<1xi32> to vector<1x1x1xi32>
    %111 = vector.extract %110[0, 0, 0] : i32 from vector<1x1x1xi32>
    %c0_45 = arith.constant 0 : index
    %c0_46 = arith.constant 0 : index
    %c9 = arith.constant 9 : index
    %112 = memref.load %arg4[%c0_45, %c0_46, %c9] : memref<1x1x12xf32, #tpu.memory_space<smem>>
    memref.store %101, %arg4[%c0_45, %c0_46, %c9] : memref<1x1x12xf32, #tpu.memory_space<smem>>
    %c0_47 = arith.constant 0 : index
    %c0_48 = arith.constant 0 : index
    %c10 = arith.constant 10 : index
    %113 = memref.load %arg4[%c0_47, %c0_48, %c10] : memref<1x1x12xf32, #tpu.memory_space<smem>>
    memref.store %106, %arg4[%c0_47, %c0_48, %c10] : memref<1x1x12xf32, #tpu.memory_space<smem>>
    %114 = arith.sitofp %111 : i32 to f32
    %c0_49 = arith.constant 0 : index
    %c0_50 = arith.constant 0 : index
    %c11 = arith.constant 11 : index
    %115 = memref.load %arg4[%c0_49, %c0_50, %c11] : memref<1x1x12xf32, #tpu.memory_space<smem>>
    memref.store %114, %arg4[%c0_49, %c0_50, %c11] : memref<1x1x12xf32, #tpu.memory_space<smem>>
    return
  }
  func.func @transform_0(%arg0: i32, %arg1: i32) -> (i32, i32, i32, i32) {
    %c0_i32 = arith.constant 0 : i32
    %c0_i32_0 = arith.constant 0 : i32
    %c0_i32_1 = arith.constant 0 : i32
    return %arg0, %c0_i32, %arg1, %c0_i32_0 : i32, i32, i32, i32
  }
  func.func @transform_1(%arg0: i32, %arg1: i32) -> (i32, i32, i32) {
    %c0_i32 = arith.constant 0 : i32
    %c0_i32_0 = arith.constant 0 : i32
    return %arg0, %arg1, %c0_i32 : i32, i32, i32
  }
  func.func @transform_2(%arg0: i32, %arg1: i32) -> (i32, i32, i32) {
    %c0_i32 = arith.constant 0 : i32
    %c0_i32_0 = arith.constant 0 : i32
    return %arg0, %arg1, %c0_i32 : i32, i32, i32
  }
}

</mosaic_0001>

<llo_original>
// kernel: tpu_custom_call.1
$region0: #{tpu_custom_call.1}
  #allocation0 [shape = 'u32[]', space=smem, size = 0x4, offset = 0x4, fixed_abs, tag = 'smem constant byte address 0x4 - core index']
  #allocation1 [shape = 'u32[144,128]{1,0:T(1,128)}', space=vmem, size = 0x12000, scoped, tag = 'internal scratch']
  %s0 = inlined_call_operand.hbm [shape: f32[2,4,8,128], index: 0, kind: input, shape index: {}]
  %s1 = inlined_call_operand.hbm [shape: s32[2,8,128], index: 1, kind: input, shape index: {}]
  %s2 = inlined_call_operand.hbm [shape: f32[2,1,12], index: 2, kind: output, shape index: {}]
  %s3 = sld [smem:[#allocation0]]
  $region49: #{tpu_custom_call.1} parent=0
    _
  %s5 = ssub.s32 1, %s3
  %s6 = scalar_select 0, %s5, %s3
  $region1: #{tpu_custom_call.1} parent=0
    #allocation2 [shape = 'u8[32768]{0}', space=vmem, size = 0x8000, scoped, tag = 'input window, operand 0']
    #allocation3 [shape = 's32[2]{0}', space=sflag, size = 0x8, scoped, tag = 'scoped memory for tpu_custom_call.1']
    #allocation4 [shape = 's32[2]{0}', space=sflag, size = 0x8, scoped, tag = 'scoped memory for tpu_custom_call.1']
    #allocation5 [shape = 'u8[8192]{0}', space=vmem, size = 0x2000, scoped, tag = 'input window, operand 1']
    #allocation6 [shape = 's32[2]{0}', space=sflag, size = 0x8, scoped, tag = 'scoped memory for tpu_custom_call.1']
    #allocation7 [shape = 'u8[1024]{0}', space=smem, size = 0x400, scoped, tag = 'output window, operand 0']
    %7 = vsyncpa [#allocation3], 0
    %s8 = scalar_lea.sflag [#allocation3], 1
    %9 = vsyncpa %s8, 0
    %10 = vsyncpa [#allocation6], 0
    %s11 = scalar_lea.sflag [#allocation6], 1
    %12 = vsyncpa %s11, 0
    %13 = vsyncpa [#allocation4], 0
    %s14 = scalar_lea.sflag [#allocation4], 1
    %15 = vsyncpa %s14, 0
    loop: start=0, step=1, limit=4
    $region2: #{tpu_custom_call.1} parent=1 // loop_pre_header
      _
    $region3: #{tpu_custom_call.1} parent=1 // loop_header
      %s17 = sphi 0, %s21
      %p18 = scmp.ge.s32.totalorder %s17, 4
      %s24 = sphi 0, %s36
      %s25 = sphi 0, %s32
      %s26 = sphi 0, %s24
      %s27 = sphi 0, %s25
      %s28 = sphi 0, %s26
      %s29 = sphi 0, %s27
      %s41 = sphi 0, %s43
      %s44 = sphi 0, %s41
      %s45 = sphi 0, %s44
      %s61 = sphi 0, %s45
      %s69 = sphi 0, %s71
      %s72 = sphi 0, %s69
      %s73 = sphi 0, %s72
      %s89 = sphi 0, %s73
      %s97 = sphi 0, %s99
      %s100 = sphi 0, %s97
      %s101 = sphi 0, %s100
      %s117 = sphi 0, %s101
    $region4: #{tpu_custom_call.1} parent=1 // loop_header_branch
      %20 = sbr.rel (%p18) target = $region8
    $region5: #{tpu_custom_call.1} parent=1 // loop_body
      %s22 = ssub.s32 %s17, 1
      %s23 = ssub.s32 %s17, 2
      %s30 = sadd.s32 1, %s25
      %p31 = scmp.ge.s32.totalorder %s30, 1
      %s32 = scalar_select %p31, 0, %s30
      %s33 = sadd.s32 1, %s24
      %s34 = scalar_select %p31, %s33, %s24
      %p35 = scmp.ge.s32.totalorder %s34, 2
      %s36 = scalar_select %p35, 0, %s34
      %s37 = ssub.s32 %s24, %s36
      %s38 = ssub.s32 %s25, %s32
      %s39 = sor.u32 %s37, %s38
      %p40 = scmp.eq.s32.totalorder %s39, 0
      %s42 = sadd.s32 %s41, 1
      %s43 = scalar_select %p40, %s41, %s42
      %p46 = pneg %p40
      %p47 = scmp.eq.s32.totalorder %s17, 1
      %p48 = por %p46, %p47
      %p49 = scmp.ne.s32.totalorder %s41, %s44
      %p50 = scmp.eq.s32.totalorder %s17, 0
      %p51 = por %p49, %p50
      %p52 = scmp.ne.s32.totalorder %s41, %s44
      %p53 = scmp.eq.s32.totalorder %s22, 1
      %p54 = por %p52, %p53
      %p55 = scmp.ne.s32.totalorder %s44, %s45
      %p56 = scmp.eq.s32.totalorder %s22, 0
      %p57 = por %p55, %p56
      %p58 = scmp.ne.s32.totalorder %s44, %s45
      %p59 = scmp.eq.s32.totalorder %s23, 1
      %p60 = por %p58, %p59
      %p62 = scmp.ne.s32.totalorder %s45, %s61
      %p63 = scmp.eq.s32.totalorder %s23, 0
      %p64 = por %p62, %p63
      %s65 = ssub.s32 %s24, %s36
      %s66 = ssub.s32 %s25, %s32
      %s67 = sor.u32 %s65, %s66
      %p68 = scmp.eq.s32.totalorder %s67, 0
      %s70 = sadd.s32 %s69, 1
      %s71 = scalar_select %p68, %s69, %s70
      %p74 = pneg %p68
      %p75 = scmp.eq.s32.totalorder %s17, 1
      %p76 = por %p74, %p75
      %p77 = scmp.ne.s32.totalorder %s69, %s72
      %p78 = scmp.eq.s32.totalorder %s17, 0
      %p79 = por %p77, %p78
      %p80 = scmp.ne.s32.totalorder %s69, %s72
      %p81 = scmp.eq.s32.totalorder %s22, 1
      %p82 = por %p80, %p81
      %p83 = scmp.ne.s32.totalorder %s72, %s73
      %p84 = scmp.eq.s32.totalorder %s22, 0
      %p85 = por %p83, %p84
      %p86 = scmp.ne.s32.totalorder %s72, %s73
      %p87 = scmp.eq.s32.totalorder %s23, 1
      %p88 = por %p86, %p87
      %p90 = scmp.ne.s32.totalorder %s73, %s89
      %p91 = scmp.eq.s32.totalorder %s23, 0
      %p92 = por %p90, %p91
      %s93 = ssub.s32 %s24, %s36
      %s94 = ssub.s32 %s25, %s32
      %s95 = sor.u32 %s93, %s94
      %p96 = scmp.eq.s32.totalorder %s95, 0
      %s98 = sadd.s32 %s97, 1
      %s99 = scalar_select %p96, %s97, %s98
      %p102 = pneg %p96
      %p103 = scmp.eq.s32.totalorder %s17, 1
      %p104 = por %p102, %p103
      %p105 = scmp.ne.s32.totalorder %s97, %s100
      %p106 = scmp.eq.s32.totalorder %s17, 0
      %p107 = por %p105, %p106
      %p108 = scmp.ne.s32.totalorder %s97, %s100
      %p109 = scmp.eq.s32.totalorder %s22, 1
      %p110 = por %p108, %p109
      %p111 = scmp.ne.s32.totalorder %s100, %s101
      %p112 = scmp.eq.s32.totalorder %s22, 0
      %p113 = por %p111, %p112
      %p114 = scmp.ne.s32.totalorder %s100, %s101
      %p115 = scmp.eq.s32.totalorder %s23, 1
      %p116 = por %p114, %p115
      %p118 = scmp.ne.s32.totalorder %s101, %s117
      %p119 = scmp.eq.s32.totalorder %s23, 0
      %p120 = por %p118, %p119
      %p121 = scmp.le.s32.totalorder 1, %s17
      %p122 = scmp.lt.s32.totalorder %s17, 3
      %p123 = pnand %p121, %p122
      %p124 = pneg %p123
      // Predicated region
      $region9: #{tpu_custom_call.1} parent=5 // pred_check
        _
      $region10: #{tpu_custom_call.1} parent=5 // pred_check_branch
        %126 = sbr.rel (%p123) target = $region12
      $region11: #{tpu_custom_call.1} parent=5 // pred_region
        %s127 = ssub.s32 %s17, 1
      $region12: #{tpu_custom_call.1} parent=5 // pred_fallthru
        _
      %p128 = scmp.lt.s32.totalorder %s17, 2
      // Predicated region
      $region13: #{tpu_custom_call.1} parent=5 // pred_check
        %p129 = pneg %p128
      $region14: #{tpu_custom_call.1} parent=5 // pred_check_branch
        %131 = sbr.rel (%p129) target = $region16
      $region15: #{tpu_custom_call.1} parent=5 // pred_region
        // Predicated region
        $region17: #{tpu_custom_call.1} parent=15 // pred_check
          %p132 = pneg %p51
        $region18: #{tpu_custom_call.1} parent=15 // pred_check_branch
          %134 = sbr.rel (%p132) target = $region20
        $region19: #{tpu_custom_call.1} parent=15 // pred_region
          %s135 = sand.u32 %s41, 1
          %s136 = scalar_lea.sflag [#allocation3], %s135
          %s137 = sand.u32 %s41, 1
          %s138 = smul.addr %s137, 32
          %s139 = scalar_lea.vmem [#allocation2], %s138
          %s141 = ssub.s32 512, 512
          %142 = vsyncadd %s136, %s141
          %s143 = smul.addr %s24, 4
          %s144 = sadd.s32 %s25, %s143
          %s145 = smul.addr %s144, 128
          %s146 = scalar_lea.hbm %s0, %s145
          %s147 = sshll.u32 %s139, 4
          %s148 = int_to_ptr.vmem [resolvable:$true] %s147
          %153 = dma.hbm_to_vmem [thread:$0]  %s146, 512, %s148, %s136, 128, 128, 8
        $region20: #{tpu_custom_call.1} parent=15 // pred_fallthru
          _
        // Predicated region
        $region21: #{tpu_custom_call.1} parent=15 // pred_check
          %p154 = pneg %p79
        $region22: #{tpu_custom_call.1} parent=15 // pred_check_branch
          %156 = sbr.rel (%p154) target = $region24
        $region23: #{tpu_custom_call.1} parent=15 // pred_region
          %s157 = sand.u32 %s69, 1
          %s158 = scalar_lea.sflag [#allocation6], %s157
          %s159 = sand.u32 %s69, 1
          %s160 = smul.addr %s159, 8
          %s161 = scalar_lea.vmem [#allocation5], %s160
          %s163 = ssub.s32 128, 128
          %164 = vsyncadd %s158, %s163
          %s165 = sadd.s32 %s25, %s24
          %s166 = smul.addr %s165, 128
          %s167 = scalar_lea.hbm %s1, %s166
          %s169 = sshll.u32 %s161, 4
          %s170 = int_to_ptr.vmem [resolvable:$true] %s169
          %172 = dma.hbm_to_vmem [thread:$0]  %s167, 128, %s170, %s158
        $region24: #{tpu_custom_call.1} parent=15 // pred_fallthru
          _
      $region16: #{tpu_custom_call.1} parent=5 // pred_fallthru
        _
      %p173 = scmp.le.s32.totalorder 1, %s17
      %p174 = scmp.lt.s32.totalorder %s17, 3
      %p175 = pnand %p173, %p174
      %p176 = pneg %p175
      // Predicated region
      $region25: #{tpu_custom_call.1} parent=5 // pred_check
        _
      $region26: #{tpu_custom_call.1} parent=5 // pred_check_branch
        %178 = sbr.rel (%p175) target = $region28
      $region27: #{tpu_custom_call.1} parent=5 // pred_region
        %s179 = ssub.s32 %s17, 1
        %s180 = sand.u32 %s44, 1
        %s181 = scalar_lea.sflag [#allocation3], %s180
        %s182 = sand.u32 %s44, 1
        %s183 = smul.addr %s182, 32
        %s184 = scalar_lea.vmem [#allocation2], %s183
        // Predicated region
        $region29: #{tpu_custom_call.1} parent=27 // pred_check
          %p185 = pneg %p57
        $region30: #{tpu_custom_call.1} parent=27 // pred_check_branch
          %187 = sbr.rel (%p185) target = $region32
        $region31: #{tpu_custom_call.1} parent=27 // pred_region
          %188 = dma.done %s181, 512
        $region32: #{tpu_custom_call.1} parent=27 // pred_fallthru
          _
        %s189 = sand.u32 %s72, 1
        %s190 = scalar_lea.sflag [#allocation6], %s189
        %s191 = sand.u32 %s72, 1
        %s192 = smul.addr %s191, 8
        %s193 = scalar_lea.vmem [#allocation5], %s192
        // Predicated region
        $region33: #{tpu_custom_call.1} parent=27 // pred_check
          %p194 = pneg %p85
        $region34: #{tpu_custom_call.1} parent=27 // pred_check_branch
          %196 = sbr.rel (%p194) target = $region36
        $region35: #{tpu_custom_call.1} parent=27 // pred_region
          %197 = dma.done %s190, 128
        $region36: #{tpu_custom_call.1} parent=27 // pred_fallthru
          _
        %s198 = sand.u32 %s44, 1
        %s199 = scalar_lea.sflag [#allocation3], %s198
        %s200 = sand.u32 %s44, 1
        %s201 = smul.addr %s200, 32
        %s202 = scalar_lea.vmem [#allocation2], %s201
        %p203 = pneg %p57
        %p204 = pneg %p54
        %s205 = sand.u32 %s72, 1
        %s206 = scalar_lea.sflag [#allocation6], %s205
        %s207 = sand.u32 %s72, 1
        %s208 = smul.addr %s207, 8
        %s209 = scalar_lea.vmem [#allocation5], %s208
        %p210 = pneg %p85
        %p211 = pneg %p82
        %p212 = pneg %p113
        %p213 = pneg %p110
        %s214 = sand.u32 %s100, 1
        %s215 = scalar_lea.sflag [#allocation4], %s214
        %s216 = sand.u32 %s100, 1
        %s217 = smul.addr %s216, 128
        %s218 = scalar_lea.smem [#allocation7], %s217
        %v219 = vld [vmem:[%s193] sm:$0xff]
        %v220 = vld [vmem:[%s184] sm:$0xff]
        %v221 = vld [vmem:[%s184 + $0x8] sm:$0xff]
        %v222 = vld [vmem:[%s184 + $0x10] sm:$0xff]
        %v223 = vld [vmem:[%s184 + $0x18] sm:$0xff]
        %v224 = vmax.f32 %v220, %v221
        %v225 = vmax.f32 %v222, %v223
        %v226 = vmax.f32 %v224, %v225
        %v227 = vsub.f32 %v220, %v226
        %v228 = vsub.f32 %v221, %v226
        %v229 = vsub.f32 %v222, %v226
        %v230 = vsub.f32 %v223, %v226
        %v231 = vmul.f32 %v227, 1.442695
        %v232 = vpow.pop %v231
        %v233 = vmul.f32 %v228, 1.442695
        %v234 = vpow.pop %v233
        %v235 = vmul.f32 %v229, 1.442695
        %v236 = vpow.pop %v235
        %v237 = vmul.f32 %v230, 1.442695
        %v238 = vpow.pop %v237
        %v239 = vadd.f32 %v232, %v234
        %v240 = vadd.f32 %v239, %v236
        %v241 = vadd.f32 %v240, %v238
        %v242 = vrcp.pop %v241
        %v243 = vmul.f32 1.0, %v242
        %vm244 = vcmp.ge.s32.totalorder %v219, 0
        %v245 = vsel %vm244, %v243, 0.0
        %v246 = vmul.f32 %v232, %v245
        %vm247 = vcmp.eq.s32.totalorder %v219, 0
        %v248 = vsel %vm247, %v246, 0.0
        %249 = vadd.xlane.f32.xlu0 %v248
        %v250 = vpop.xlane.xlu0 %249
        %v251 = vrot.slane %v250, 4
        %v252 = vadd.f32 %v250, %v251
        %v253 = vrot.slane %v252, 2
        %v254 = vadd.f32 %v252, %v253
        %v255 = vrot.slane %v254, 1
        %v256 = vadd.f32 %v254, %v255
        %s257 = vtos %v256
        %v258 = vmul.f32 %v246, %v246
        %259 = vadd.xlane.f32.xlu0 %v258
        %v260 = vpop.xlane.xlu0 %259
        %v261 = vrot.slane %v260, 4
        %v262 = vadd.f32 %v260, %v261
        %v263 = vrot.slane %v262, 2
        %v264 = vadd.f32 %v262, %v263
        %v265 = vrot.slane %v264, 1
        %v266 = vadd.f32 %v264, %v265
        %s267 = vtos %v266
        %v268 = vsel %vm247, 1, 0
        %v269 = vand.u32 %v268, 65535
        %v270 = vshrl.u32 %v268, 16
        %v271 = vcvt.s32.f32 %v269
        %v272 = vcvt.s32.f32 %v270
        %273 = vadd.xlane.f32.xlu0 %v271
        %v274 = vpop.xlane.xlu0 %273
        %275 = vadd.xlane.f32.xlu0 %v272
        %v276 = vpop.xlane.xlu0 %275
        %v277 = vcvt.f32.s32 %v274
        %v278 = vcvt.f32.s32 %v276
        %v279 = vshll.u32 %v278, 16
        %v280 = vadd.s32 %v279, %v277
        %v281 = vrot.slane %v280, 4
        %v282 = vadd.s32 %v280, %v281
        %v283 = vrot.slane %v282, 2
        %v284 = vadd.s32 %v282, %v283
        %v285 = vrot.slane %v284, 1
        %v286 = vadd.s32 %v284, %v285
        %s287 = vtos %v286
        %s288 = scalar_lea.smem %s218, 0 [#allocation7]
        %289 = sst [smem:[%s288]] %s257
        %s290 = scalar_lea.smem %s218, 1 [#allocation7]
        %291 = sst [smem:[%s290]] %s267
        %s292 = scvt.s32.f32 %s287
        %s293 = scalar_lea.smem %s218, 2 [#allocation7]
        %294 = sst [smem:[%s293]] %s292
        %v295 = vmul.f32 %v234, %v245
        %vm296 = vcmp.eq.s32.totalorder %v219, 1
        %v297 = vsel %vm296, %v295, 0.0
        %298 = vadd.xlane.f32.xlu0 %v297
        %v299 = vpop.xlane.xlu0 %298
        %v300 = vrot.slane %v299, 4
        %v301 = vadd.f32 %v299, %v300
        %v302 = vrot.slane %v301, 2
        %v303 = vadd.f32 %v301, %v302
        %v304 = vrot.slane %v303, 1
        %v305 = vadd.f32 %v303, %v304
        %s306 = vtos %v305
        %v307 = vmul.f32 %v295, %v295
        %308 = vadd.xlane.f32.xlu0 %v307
        %v309 = vpop.xlane.xlu0 %308
        %v310 = vrot.slane %v309, 4
        %v311 = vadd.f32 %v309, %v310
        %v312 = vrot.slane %v311, 2
        %v313 = vadd.f32 %v311, %v312
        %v314 = vrot.slane %v313, 1
        %v315 = vadd.f32 %v313, %v314
        %s316 = vtos %v315
        %v317 = vsel %vm296, 1, 0
        %v318 = vand.u32 %v317, 65535
        %v319 = vshrl.u32 %v317, 16
        %v320 = vcvt.s32.f32 %v318
        %v321 = vcvt.s32.f32 %v319
        %322 = vadd.xlane.f32.xlu0 %v320
        %v323 = vpop.xlane.xlu0 %322
        %324 = vadd.xlane.f32.xlu0 %v321
        %v325 = vpop.xlane.xlu0 %324
        %v326 = vcvt.f32.s32 %v323
        %v327 = vcvt.f32.s32 %v325
        %v328 = vshll.u32 %v327, 16
        %v329 = vadd.s32 %v328, %v326
        %v330 = vrot.slane %v329, 4
        %v331 = vadd.s32 %v329, %v330
        %v332 = vrot.slane %v331, 2
        %v333 = vadd.s32 %v331, %v332
        %v334 = vrot.slane %v333, 1
        %v335 = vadd.s32 %v333, %v334
        %s336 = vtos %v335
        %s337 = scalar_lea.smem %s218, 3 [#allocation7]
        %338 = sst [smem:[%s337]] %s306
        %s339 = scalar_lea.smem %s218, 4 [#allocation7]
        %340 = sst [smem:[%s339]] %s316
        %s341 = scvt.s32.f32 %s336
        %s342 = scalar_lea.smem %s218, 5 [#allocation7]
        %343 = sst [smem:[%s342]] %s341
        %v344 = vmul.f32 %v236, %v245
        %vm345 = vcmp.eq.s32.totalorder %v219, 2
        %v346 = vsel %vm345, %v344, 0.0
        %347 = vadd.xlane.f32.xlu0 %v346
        %v348 = vpop.xlane.xlu0 %347
        %v349 = vrot.slane %v348, 4
        %v350 = vadd.f32 %v348, %v349
        %v351 = vrot.slane %v350, 2
        %v352 = vadd.f32 %v350, %v351
        %v353 = vrot.slane %v352, 1
        %v354 = vadd.f32 %v352, %v353
        %s355 = vtos %v354
        %v356 = vmul.f32 %v344, %v344
        %357 = vadd.xlane.f32.xlu0 %v356
        %v358 = vpop.xlane.xlu0 %357
        %v359 = vrot.slane %v358, 4
        %v360 = vadd.f32 %v358, %v359
        %v361 = vrot.slane %v360, 2
        %v362 = vadd.f32 %v360, %v361
        %v363 = vrot.slane %v362, 1
        %v364 = vadd.f32 %v362, %v363
        %s365 = vtos %v364
        %v366 = vsel %vm345, 1, 0
        %v367 = vand.u32 %v366, 65535
        %v368 = vshrl.u32 %v366, 16
        %v369 = vcvt.s32.f32 %v367
        %v370 = vcvt.s32.f32 %v368
        %371 = vadd.xlane.f32.xlu0 %v369
        %v372 = vpop.xlane.xlu0 %371
        %373 = vadd.xlane.f32.xlu0 %v370
        %v374 = vpop.xlane.xlu0 %373
        %v375 = vcvt.f32.s32 %v372
        %v376 = vcvt.f32.s32 %v374
        %v377 = vshll.u32 %v376, 16
        %v378 = vadd.s32 %v377, %v375
        %v379 = vrot.slane %v378, 4
        %v380 = vadd.s32 %v378, %v379
        %v381 = vrot.slane %v380, 2
        %v382 = vadd.s32 %v380, %v381
        %v383 = vrot.slane %v382, 1
        %v384 = vadd.s32 %v382, %v383
        %s385 = vtos %v384
        %s386 = scalar_lea.smem %s218, 6 [#allocation7]
        %387 = sst [smem:[%s386]] %s355
        %s388 = scalar_lea.smem %s218, 7 [#allocation7]
        %389 = sst [smem:[%s388]] %s365
        %s390 = scvt.s32.f32 %s385
        %s391 = scalar_lea.smem %s218, 8 [#allocation7]
        %392 = sst [smem:[%s391]] %s390
        %v393 = vmul.f32 %v238, %v245
        %vm394 = vcmp.eq.s32.totalorder %v219, 3
        %v395 = vsel %vm394, %v393, 0.0
        %396 = vadd.xlane.f32.xlu0 %v395
        %v397 = vpop.xlane.xlu0 %396
        %v398 = vrot.slane %v397, 4
        %v399 = vadd.f32 %v397, %v398
        %v400 = vrot.slane %v399, 2
        %v401 = vadd.f32 %v399, %v400
        %v402 = vrot.slane %v401, 1
        %v403 = vadd.f32 %v401, %v402
        %s404 = vtos %v403
        %v405 = vmul.f32 %v393, %v393
        %406 = vadd.xlane.f32.xlu0 %v405
        %v407 = vpop.xlane.xlu0 %406
        %v408 = vrot.slane %v407, 4
        %v409 = vadd.f32 %v407, %v408
        %v410 = vrot.slane %v409, 2
        %v411 = vadd.f32 %v409, %v410
        %v412 = vrot.slane %v411, 1
        %v413 = vadd.f32 %v411, %v412
        %s414 = vtos %v413
        %v415 = vsel %vm394, 1, 0
        %v416 = vand.u32 %v415, 65535
        %v417 = vshrl.u32 %v415, 16
        %v418 = vcvt.s32.f32 %v416
        %v419 = vcvt.s32.f32 %v417
        %420 = vadd.xlane.f32.xlu0 %v418
        %v421 = vpop.xlane.xlu0 %420
        %422 = vadd.xlane.f32.xlu0 %v419
        %v423 = vpop.xlane.xlu0 %422
        %v424 = vcvt.f32.s32 %v421
        %v425 = vcvt.f32.s32 %v423
        %v426 = vshll.u32 %v425, 16
        %v427 = vadd.s32 %v426, %v424
        %v428 = vrot.slane %v427, 4
        %v429 = vadd.s32 %v427, %v428
        %v430 = vrot.slane %v429, 2
        %v431 = vadd.s32 %v429, %v430
        %v432 = vrot.slane %v431, 1
        %v433 = vadd.s32 %v431, %v432
        %s434 = vtos %v433
        %s435 = scalar_lea.smem %s218, 9 [#allocation7]
        %436 = sst [smem:[%s435]] %s404
        %s437 = scalar_lea.smem %s218, 10 [#allocation7]
        %438 = sst [smem:[%s437]] %s414
        %s439 = scvt.s32.f32 %s434
        %s440 = scalar_lea.smem %s218, 11 [#allocation7]
        %441 = sst [smem:[%s440]] %s439
        %s442 = sand.u32 %s100, 1
        %s443 = scalar_lea.sflag [#allocation4], %s442
        %s444 = sand.u32 %s100, 1
        %s445 = smul.addr %s444, 128
        %s446 = scalar_lea.smem [#allocation7], %s445
        // Predicated region
        $region37: #{tpu_custom_call.1} parent=27 // pred_check
          %p447 = pneg %p110
        $region38: #{tpu_custom_call.1} parent=27 // pred_check_branch
          %449 = sbr.rel (%p447) target = $region40
        $region39: #{tpu_custom_call.1} parent=27 // pred_region
          %s451 = ssub.s32 16, 16
          %452 = vsyncadd %s443, %s451
          %s453 = sadd.s32 %s27, %s26
          %s454 = smul.addr %s453, 16
          %s455 = scalar_lea.hbm %s2, %s454
          %458 = dma.smem_to_hbm %s446, 16, %s455, %s443
        $region40: #{tpu_custom_call.1} parent=27 // pred_fallthru
          _
      $region28: #{tpu_custom_call.1} parent=5 // pred_fallthru
        _
      %p459 = scmp.le.s32.totalorder 2, %s17
      // Predicated region
      $region41: #{tpu_custom_call.1} parent=5 // pred_check
        %p460 = pneg %p459
      $region42: #{tpu_custom_call.1} parent=5 // pred_check_branch
        %462 = sbr.rel (%p460) target = $region44
      $region43: #{tpu_custom_call.1} parent=5 // pred_region
        %s463 = ssub.s32 %s17, 2
        // Predicated region
        $region45: #{tpu_custom_call.1} parent=43 // pred_check
          %p464 = pneg %p116
        $region46: #{tpu_custom_call.1} parent=43 // pred_check_branch
          %466 = sbr.rel (%p464) target = $region48
        $region47: #{tpu_custom_call.1} parent=43 // pred_region
          %s467 = sand.u32 %s101, 1
          %s468 = scalar_lea.sflag [#allocation4], %s467
          %s469 = sand.u32 %s101, 1
          %s470 = smul.addr %s469, 128
          %s471 = scalar_lea.smem [#allocation7], %s470
          %472 = dma.done %s468, 16
        $region48: #{tpu_custom_call.1} parent=43 // pred_fallthru
          _
        %473 = sfence
      $region44: #{tpu_custom_call.1} parent=5 // pred_fallthru
        _
    $region6: #{tpu_custom_call.1} parent=1 // loop_footer
      %s21 = sadd.s32 1, %s17
    $region7: #{tpu_custom_call.1} parent=1 // loop_footer_branch
      %16 = sbr.rel target = $region3
    $region8: #{tpu_custom_call.1} parent=1 // loop_exit
      _
    %474 = vsyncpa [#allocation3], 1
    %s475 = scalar_lea.sflag [#allocation3], 1
    %476 = vsyncpa %s475, 1
    %477 = vsyncpa [#allocation6], 1
    %s478 = scalar_lea.sflag [#allocation6], 1
    %479 = vsyncpa %s478, 1
    %480 = vsyncpa [#allocation4], 1
    %s481 = scalar_lea.sflag [#allocation4], 1
    %482 = vsyncpa %s481, 1

</llo_original>
